<compile_context>
chip_gen: v7x
topology: tpu7x:2x2x1
jax: 0.10.0
libtpu: 0.0.40
codegen_flags: <defaults>
</compile_context>

<pallas_src>
import functools

import jax
import jax.numpy as jnp
from jax.experimental import pallas as pl
from jax.experimental.pallas import tpu as pltpu

_LANE = 128
_EPS = 1e-5


def _round_up(v, m):
    return (v + m - 1) // m * m


def mlp_kernel(x_ref, w1_ref, gamma_ref, beta_ref, w2_ref, b2_ref,
               out_ref, sum_ref, sumsq_ref, *, n_rows, eps):
    phase = pl.program_id(0)   # 0 = accumulate BN stats, 1 = apply + matmul2
    tile = pl.program_id(1)    # row tile of the batch

    @pl.when(jnp.logical_and(phase == 0, tile == 0))
    def _init():
        sum_ref[...] = jnp.zeros_like(sum_ref)
        sumsq_ref[...] = jnp.zeros_like(sumsq_ref)

    @pl.when(phase == 0)
    def _accumulate_stats():
        # bf16 x bf16 -> f32 on the MXU; zero-padded batch rows contribute 0
        # to the sums (layer-1 bias is folded away).
        h = jnp.dot(x_ref[...], w1_ref[...], preferred_element_type=jnp.float32)
        sum_ref[...] += jnp.sum(h, axis=0, keepdims=True)
        sumsq_ref[...] += jnp.sum(h * h, axis=0, keepdims=True)

    @pl.when(phase == 1)
    def _apply():
        inv_n = 1.0 / n_rows
        mean = sum_ref[...] * inv_n
        var = jnp.maximum(sumsq_ref[...] * inv_n - mean * mean, 0.0)
        scale = jax.lax.rsqrt(var + eps) * gamma_ref[...]

        h = jnp.dot(x_ref[...], w1_ref[...], preferred_element_type=jnp.float32)
        h = (h - mean) * scale + beta_ref[...]
        h = jnp.maximum(h, 0.0)

        out = jnp.dot(h.astype(w2_ref.dtype), w2_ref[...],
                      preferred_element_type=jnp.float32) + b2_ref[...]
        out_ref[...] = out.astype(out_ref.dtype)


def prepare_params(w1, b1, gamma, beta, w2, b2):
    """One-time preprocessing (hoisted out of the per-call path).

    PyTorch-layout weights [out, in] are transposed to [in, out], lane dims
    zero-padded to multiples of 128, matmul operands cast to bf16.  b1 is
    dropped: a bias added before training-mode BatchNorm is cancelled exactly
    by the batch-mean subtraction.
    """
    del b1
    nhid, nfeat = w1.shape
    nclass = w2.shape[0]
    f_pad = _round_up(nfeat, _LANE)
    h_pad = _round_up(nhid, _LANE)
    c_pad = _round_up(nclass, _LANE)

    w1_t = jnp.zeros((f_pad, h_pad), jnp.float32)
    w1_t = w1_t.at[:nfeat, :nhid].set(jnp.asarray(w1, jnp.float32).T)
    w2_t = jnp.zeros((h_pad, c_pad), jnp.float32)
    w2_t = w2_t.at[:nhid, :nclass].set(jnp.asarray(w2, jnp.float32).T)
    g = jnp.zeros((1, h_pad), jnp.float32).at[0, :nhid].set(
        jnp.asarray(gamma, jnp.float32))
    be = jnp.zeros((1, h_pad), jnp.float32).at[0, :nhid].set(
        jnp.asarray(beta, jnp.float32))
    b2_r = jnp.zeros((1, c_pad), jnp.float32).at[0, :nclass].set(
        jnp.asarray(b2, jnp.float32))

    return {
        "w1": w1_t.astype(jnp.bfloat16),
        "w2": w2_t.astype(jnp.bfloat16),
        "gamma": g, "beta": be, "b2": b2_r,
        "nfeat": nfeat, "nhid": nhid, "nclass": nclass,
        "f_pad": f_pad, "h_pad": h_pad, "c_pad": c_pad,
    }


def mlp_forward(x, params, *, tile_n=256):
    """x: [N, nfeat].  Returns [N, nclass] float32 (training-mode BatchNorm)."""
    n, nfeat = x.shape
    assert nfeat == params["nfeat"]
    f_pad, h_pad, c_pad = params["f_pad"], params["h_pad"], params["c_pad"]

    # Batch tiling: zero-padded rows contribute nothing to the BN sums and the
    # statistics divide by the true n, so padding is semantics-preserving.
    n_min = _round_up(max(n, 8), 8)
    tn = min(tile_n, n_min)
    n_pad = _round_up(n_min, tn)
    n_tiles = n_pad // tn

    xp = jnp.zeros((n_pad, f_pad), jnp.float32)
    xp = xp.at[:n, :nfeat].set(jnp.asarray(x, jnp.float32)).astype(jnp.bfloat16)

    kernel = functools.partial(mlp_kernel, n_rows=float(n), eps=_EPS)

    out = pl.pallas_call(
        kernel,
        out_shape=jax.ShapeDtypeStruct((n_pad, c_pad), jnp.float32),
        grid_spec=pltpu.PrefetchScalarGridSpec(
            num_scalar_prefetch=0,
            grid=(2, n_tiles),   # (phase, row-tile): phase 0 = stats, 1 = apply
            in_specs=[
                pl.BlockSpec((tn, f_pad), lambda p, i: (i, 0)),      # x tile
                pl.BlockSpec((f_pad, h_pad), lambda p, i: (0, 0)),   # w1 (resident)
                pl.BlockSpec((1, h_pad), lambda p, i: (0, 0)),       # gamma
                pl.BlockSpec((1, h_pad), lambda p, i: (0, 0)),       # beta
                pl.BlockSpec((h_pad, c_pad), lambda p, i: (0, 0)),   # w2 (resident)
                pl.BlockSpec((1, c_pad), lambda p, i: (0, 0)),       # b2
            ],
            # Phase 0 never writes the output; parking it on block 0 (i*p == 0)
            # avoids flushing garbage tiles.  Phase 1 writes lane-dense
            # (tn, 128*k) tiles -> unmasked stores.
            out_specs=pl.BlockSpec((tn, c_pad), lambda p, i: (i * p, 0)),
            scratch_shapes=[pltpu.VMEM((1, h_pad), jnp.float32),   # sum(h)
                            pltpu.VMEM((1, h_pad), jnp.float32)],  # sum(h*h)
        ),
        compiler_params=pltpu.CompilerParams(
            # Both axes are sequential: axis 0 orders the two passes, axis 1
            # carries the cross-tile BatchNorm statistics accumulation.
            dimension_semantics=("arbitrary", "arbitrary"),
            vmem_limit_bytes=32 * 1024 * 1024,
        ),
    )(xp, params["w1"], params["gamma"], params["beta"],
      params["w2"], params["b2"])

    return out[:n, :params["nclass"]]


def _reference(x, w1, b1, gamma, beta, w2, b2):
    # Pure-f32 reference matching the PyTorch module in its default training
    # state (batch statistics, biased variance, eps=1e-5).
    h = x @ w1.T + b1
    mean = h.mean(axis=0, keepdims=True)
    var = ((h - mean) ** 2).mean(axis=0, keepdims=True)
    h = (h - mean) / jnp.sqrt(var + 1e-5) * gamma + beta
    h = jnp.maximum(h, 0.0)
    return h @ w2.T + b2


if __name__ == "__main__":
    nfeat, nhid, nclass = 16, 32, 8
    batch = 8

    key = jax.random.PRNGKey(0)
    kx, k1, kb1, k2, kb2 = jax.random.split(key, 5)

    x = jax.random.normal(kx, (batch, nfeat), jnp.float32)
    bound1 = 1.0 / (nfeat ** 0.5)
    w1 = jax.random.uniform(k1, (nhid, nfeat), jnp.float32, -bound1, bound1)
    b1 = jax.random.uniform(kb1, (nhid,), jnp.float32, -bound1, bound1)
    bound2 = 1.0 / (nhid ** 0.5)
    w2 = jax.random.uniform(k2, (nclass, nhid), jnp.float32, -bound2, bound2)
    b2 = jax.random.uniform(kb2, (nclass,), jnp.float32, -bound2, bound2)
    gamma = jnp.ones((nhid,), jnp.float32)   # BatchNorm1d default affine weight
    beta = jnp.zeros((nhid,), jnp.float32)   # BatchNorm1d default affine bias

    params = prepare_params(w1, b1, gamma, beta, w2, b2)

    # Single-tile path (whole batch in one row tile).
    out = mlp_forward(x, params)
    jax.block_until_ready(out)
    ref = _reference(x, w1, b1, gamma, beta, w2, b2)
    assert out.shape == (batch, nclass)
    # bf16 MXU inputs -> looser tolerance than the f32-only version.
    assert jnp.allclose(out, ref, atol=5e-2, rtol=5e-2), \
        float(jnp.max(jnp.abs(out - ref)))

    # Multi-tile path: exercises the two-pass cross-tile BatchNorm reduction.
    batch2 = 24
    x2 = jax.random.normal(jax.random.PRNGKey(1), (batch2, nfeat), jnp.float32)
    out2 = mlp_forward(x2, params, tile_n=8)
    jax.block_until_ready(out2)
    ref2 = _reference(x2, w1, b1, gamma, beta, w2, b2)
    assert out2.shape == (batch2, nclass)
    assert jnp.allclose(out2, ref2, atol=5e-2, rtol=5e-2), \
        float(jnp.max(jnp.abs(out2 - ref2)))

    print("KERNEL_OK")
</pallas_src>

<mosaic_0001>
module attributes {stable_mosaic.version = 11 : i64} {
  func.func @mlp_kernel(%arg0: i32, %arg1: i32, %arg2: memref<8x128xbf16, #tpu.memory_space<vmem>>, %arg3: memref<128x128xbf16, #tpu.memory_space<vmem>>, %arg4: memref<1x128xf32, #tpu.memory_space<vmem>>, %arg5: memref<1x128xf32, #tpu.memory_space<vmem>>, %arg6: memref<128x128xbf16, #tpu.memory_space<vmem>>, %arg7: memref<1x128xf32, #tpu.memory_space<vmem>>, %arg8: memref<8x128xf32, #tpu.memory_space<vmem>>, %arg9: memref<1x128xf32, #tpu.memory_space<vmem>>, %arg10: memref<1x128xf32, #tpu.memory_space<vmem>>) attributes {dimension_semantics = [#tpu.dimension_semantics<arbitrary>, #tpu.dimension_semantics<arbitrary>], iteration_bounds = array<i64: 2, 1>, scalar_prefetch = 0 : i64, scratch_operands = 2 : i64, tpu.core_type = #tpu.core_type<tc>, window_params = [{transform_indices = @transform_0, window_bounds = array<i64: 8, 128>}, {pipeline_mode = #tpu.pipeline_mode<synchronous>, transform_indices = @transform_1, window_bounds = array<i64: 128, 128>}, {pipeline_mode = #tpu.pipeline_mode<synchronous>, transform_indices = @transform_2, window_bounds = array<i64: 1, 128>}, {pipeline_mode = #tpu.pipeline_mode<synchronous>, transform_indices = @transform_3, window_bounds = array<i64: 1, 128>}, {pipeline_mode = #tpu.pipeline_mode<synchronous>, transform_indices = @transform_4, window_bounds = array<i64: 128, 128>}, {pipeline_mode = #tpu.pipeline_mode<synchronous>, transform_indices = @transform_5, window_bounds = array<i64: 1, 128>}, {transform_indices = @transform_6, window_bounds = array<i64: 8, 128>}]} {
    %c0_i32 = arith.constant 0 : i32
    %0 = arith.cmpi eq, %arg0, %c0_i32 : i32
    %c0_i32_0 = arith.constant 0 : i32
    %1 = arith.cmpi eq, %arg1, %c0_i32_0 : i32
    %2 = arith.andi %0, %1 : i1
    %3 = arith.extui %2 : i1 to i32
    %c0_i32_1 = arith.constant 0 : i32
    %4 = arith.cmpi ne, %3, %c0_i32_1 : i32
    scf.if %4 {
      %cst = arith.constant 0.000000e+00 : f32
      %11 = vector.broadcast %cst : f32 to vector<1x128xf32>
      %c0 = arith.constant 0 : index
      %c0_5 = arith.constant 0 : index
      %12 = vector.load %arg9[%c0, %c0_5] : memref<1x128xf32, #tpu.memory_space<vmem>>, vector<1x128xf32>
      tpu.vector_store %arg9[%c0, %c0_5], %11 {strides = array<i32>} : memref<1x128xf32, #tpu.memory_space<vmem>>, vector<1x128xf32>,
      %cst_6 = arith.constant 0.000000e+00 : f32
      %13 = vector.broadcast %cst_6 : f32 to vector<1x128xf32>
      %c0_7 = arith.constant 0 : index
      %c0_8 = arith.constant 0 : index
      %14 = vector.load %arg10[%c0_7, %c0_8] : memref<1x128xf32, #tpu.memory_space<vmem>>, vector<1x128xf32>
      tpu.vector_store %arg10[%c0_7, %c0_8], %13 {strides = array<i32>} : memref<1x128xf32, #tpu.memory_space<vmem>>, vector<1x128xf32>,
    } else {
    }
    %c0_i32_2 = arith.constant 0 : i32
    %5 = arith.cmpi eq, %arg0, %c0_i32_2 : i32
    %6 = arith.extui %5 : i1 to i32
    %c0_i32_3 = arith.constant 0 : i32
    %7 = arith.cmpi ne, %6, %c0_i32_3 : i32
    scf.if %7 {
      %c0 = arith.constant 0 : index
      %c0_5 = arith.constant 0 : index
      %11 = vector.load %arg2[%c0, %c0_5] : memref<8x128xbf16, #tpu.memory_space<vmem>>, vector<8x128xbf16>
      %c0_6 = arith.constant 0 : index
      %c0_7 = arith.constant 0 : index
      %12 = vector.load %arg3[%c0_6, %c0_7] : memref<128x128xbf16, #tpu.memory_space<vmem>>, vector<128x128xbf16>
      %cst = arith.constant dense<0.000000e+00> : vector<8x128xf32>
      %13 = tpu.matmul %11, %12, %cst {dimension_numbers = #tpu.dot_dimension_numbers<[1], [0], [0], [1], [0, 0, 1, 1], [], []>} : vector<8x128xbf16>, vector<128x128xbf16>, vector<8x128xf32> -> vector<8x128xf32>
      %c0_8 = arith.constant 0 : index
      %c0_9 = arith.constant 0 : index
      %14 = vector.load %arg9[%c0_8, %c0_9] : memref<1x128xf32, #tpu.memory_space<vmem>>, vector<1x128xf32>
      %cst_10 = arith.constant dense<0.000000e+00> : vector<128xf32>
      %15 = vector.multi_reduction <add>, %13, %cst_10 [0] : vector<8x128xf32> to vector<128xf32>
      %16 = vector.shape_cast %15 : vector<128xf32> to vector<1x128xf32>
      %17 = arith.addf %14, %16 : vector<1x128xf32>
      %c0_11 = arith.constant 0 : index
      %c0_12 = arith.constant 0 : index
      %18 = vector.load %arg9[%c0_11, %c0_12] : memref<1x128xf32, #tpu.memory_space<vmem>>, vector<1x128xf32>
      tpu.vector_store %arg9[%c0_11, %c0_12], %17 {strides = array<i32>} : memref<1x128xf32, #tpu.memory_space<vmem>>, vector<1x128xf32>,
      %c0_13 = arith.constant 0 : index
      %c0_14 = arith.constant 0 : index
      %19 = vector.load %arg10[%c0_13, %c0_14] : memref<1x128xf32, #tpu.memory_space<vmem>>, vector<1x128xf32>
      %20 = arith.mulf %13, %13 : vector<8x128xf32>
      %cst_15 = arith.constant dense<0.000000e+00> : vector<128xf32>
      %21 = vector.multi_reduction <add>, %20, %cst_15 [0] : vector<8x128xf32> to vector<128xf32>
      %22 = vector.shape_cast %21 : vector<128xf32> to vector<1x128xf32>
      %23 = arith.addf %19, %22 : vector<1x128xf32>
      %c0_16 = arith.constant 0 : index
      %c0_17 = arith.constant 0 : index
      %24 = vector.load %arg10[%c0_16, %c0_17] : memref<1x128xf32, #tpu.memory_space<vmem>>, vector<1x128xf32>
      tpu.vector_store %arg10[%c0_16, %c0_17], %23 {strides = array<i32>} : memref<1x128xf32, #tpu.memory_space<vmem>>, vector<1x128xf32>,
    } else {
    }
    %c1_i32 = arith.constant 1 : i32
    %8 = arith.cmpi eq, %arg0, %c1_i32 : i32
    %9 = arith.extui %8 : i1 to i32
    %c0_i32_4 = arith.constant 0 : i32
    %10 = arith.cmpi ne, %9, %c0_i32_4 : i32
    scf.if %10 {
      %c0 = arith.constant 0 : index
      %c0_5 = arith.constant 0 : index
      %11 = vector.load %arg9[%c0, %c0_5] : memref<1x128xf32, #tpu.memory_space<vmem>>, vector<1x128xf32>
      %cst = arith.constant 1.250000e-01 : f32
      %12 = vector.broadcast %cst : f32 to vector<1x128xf32>
      %13 = arith.mulf %11, %12 : vector<1x128xf32>
      %c0_6 = arith.constant 0 : index
      %c0_7 = arith.constant 0 : index
      %14 = vector.load %arg10[%c0_6, %c0_7] : memref<1x128xf32, #tpu.memory_space<vmem>>, vector<1x128xf32>
      %cst_8 = arith.constant 1.250000e-01 : f32
      %15 = vector.broadcast %cst_8 : f32 to vector<1x128xf32>
      %16 = arith.mulf %14, %15 : vector<1x128xf32>
      %17 = arith.mulf %13, %13 : vector<1x128xf32>
      %18 = arith.subf %16, %17 : vector<1x128xf32>
      %cst_9 = arith.constant 0.000000e+00 : f32
      %19 = vector.broadcast %cst_9 : f32 to vector<1x128xf32>
      %20 = arith.maximumf %18, %19 : vector<1x128xf32>
      %cst_10 = arith.constant 9.99999974E-6 : f32
      %21 = vector.broadcast %cst_10 : f32 to vector<1x128xf32>
      %22 = arith.addf %20, %21 : vector<1x128xf32>
      %23 = math.rsqrt %22 : vector<1x128xf32>
      %c0_11 = arith.constant 0 : index
      %c0_12 = arith.constant 0 : index
      %24 = vector.load %arg4[%c0_11, %c0_12] : memref<1x128xf32, #tpu.memory_space<vmem>>, vector<1x128xf32>
      %25 = arith.mulf %23, %24 : vector<1x128xf32>
      %c0_13 = arith.constant 0 : index
      %c0_14 = arith.constant 0 : index
      %26 = vector.load %arg2[%c0_13, %c0_14] : memref<8x128xbf16, #tpu.memory_space<vmem>>, vector<8x128xbf16>
      %c0_15 = arith.constant 0 : index
      %c0_16 = arith.constant 0 : index
      %27 = vector.load %arg3[%c0_15, %c0_16] : memref<128x128xbf16, #tpu.memory_space<vmem>>, vector<128x128xbf16>
      %cst_17 = arith.constant dense<0.000000e+00> : vector<8x128xf32>
      %28 = tpu.matmul %26, %27, %cst_17 {dimension_numbers = #tpu.dot_dimension_numbers<[1], [0], [0], [1], [0, 0, 1, 1], [], []>} : vector<8x128xbf16>, vector<128x128xbf16>, vector<8x128xf32> -> vector<8x128xf32>
      %29 = vector.broadcast %13 : vector<1x128xf32> to vector<8x128xf32>
      %30 = arith.subf %28, %29 : vector<8x128xf32>
      %31 = vector.broadcast %25 : vector<1x128xf32> to vector<8x128xf32>
      %32 = arith.mulf %30, %31 : vector<8x128xf32>
      %c0_18 = arith.constant 0 : index
      %c0_19 = arith.constant 0 : index
      %33 = vector.load %arg5[%c0_18, %c0_19] : memref<1x128xf32, #tpu.memory_space<vmem>>, vector<1x128xf32>
      %34 = vector.broadcast %33 : vector<1x128xf32> to vector<8x128xf32>
      %35 = arith.addf %32, %34 : vector<8x128xf32>
      %cst_20 = arith.constant 0.000000e+00 : f32
      %36 = vector.broadcast %cst_20 : f32 to vector<8x128xf32>
      %37 = arith.maximumf %35, %36 : vector<8x128xf32>
      %38 = arith.truncf %37 : vector<8x128xf32> to vector<8x128xbf16>
      %c0_21 = arith.constant 0 : index
      %c0_22 = arith.constant 0 : index
      %39 = vector.load %arg6[%c0_21, %c0_22] : memref<128x128xbf16, #tpu.memory_space<vmem>>, vector<128x128xbf16>
      %cst_23 = arith.constant dense<0.000000e+00> : vector<8x128xf32>
      %40 = tpu.matmul %38, %39, %cst_23 {dimension_numbers = #tpu.dot_dimension_numbers<[1], [0], [0], [1], [0, 0, 1, 1], [], []>} : vector<8x128xbf16>, vector<128x128xbf16>, vector<8x128xf32> -> vector<8x128xf32>
      %c0_24 = arith.constant 0 : index
      %c0_25 = arith.constant 0 : index
      %41 = vector.load %arg7[%c0_24, %c0_25] : memref<1x128xf32, #tpu.memory_space<vmem>>, vector<1x128xf32>
      %42 = vector.broadcast %41 : vector<1x128xf32> to vector<8x128xf32>
      %43 = arith.addf %40, %42 : vector<8x128xf32>
      %c0_26 = arith.constant 0 : index
      %c0_27 = arith.constant 0 : index
      %44 = vector.load %arg8[%c0_26, %c0_27] : memref<8x128xf32, #tpu.memory_space<vmem>>, vector<8x128xf32>
      tpu.vector_store %arg8[%c0_26, %c0_27], %43 {strides = array<i32>} : memref<8x128xf32, #tpu.memory_space<vmem>>, vector<8x128xf32>,
    } else {
    }
    return
  }
  func.func @transform_0(%arg0: i32, %arg1: i32) -> (i32, i32) {
    %c0_i32 = arith.constant 0 : i32
    %c0_i32_0 = arith.constant 0 : i32
    return %arg1, %c0_i32 : i32, i32
  }
  func.func @transform_1(%arg0: i32, %arg1: i32) -> (i32, i32) {
    %c0_i32 = arith.constant 0 : i32
    %c0_i32_0 = arith.constant 0 : i32
    %c0_i32_1 = arith.constant 0 : i32
    return %c0_i32, %c0_i32_0 : i32, i32
  }
  func.func @transform_2(%arg0: i32, %arg1: i32) -> (i32, i32) {
    %c0_i32 = arith.constant 0 : i32
    %c0_i32_0 = arith.constant 0 : i32
    %c0_i32_1 = arith.constant 0 : i32
    return %c0_i32, %c0_i32_0 : i32, i32
  }
  func.func @transform_3(%arg0: i32, %arg1: i32) -> (i32, i32) {
    %c0_i32 = arith.constant 0 : i32
    %c0_i32_0 = arith.constant 0 : i32
    %c0_i32_1 = arith.constant 0 : i32
    return %c0_i32, %c0_i32_0 : i32, i32
  }
  func.func @transform_4(%arg0: i32, %arg1: i32) -> (i32, i32) {
    %c0_i32 = arith.constant 0 : i32
    %c0_i32_0 = arith.constant 0 : i32
    %c0_i32_1 = arith.constant 0 : i32
    return %c0_i32, %c0_i32_0 : i32, i32
  }
  func.func @transform_5(%arg0: i32, %arg1: i32) -> (i32, i32) {
    %c0_i32 = arith.constant 0 : i32
    %c0_i32_0 = arith.constant 0 : i32
    %c0_i32_1 = arith.constant 0 : i32
    return %c0_i32, %c0_i32_0 : i32, i32
  }
  func.func @transform_6(%arg0: i32, %arg1: i32) -> (i32, i32) {
    %0 = arith.muli %arg1, %arg0 : i32
    %c0_i32 = arith.constant 0 : i32
    %c0_i32_0 = arith.constant 0 : i32
    return %0, %c0_i32 : i32, i32
  }
}

</mosaic_0001>

<llo_original>
// kernel: tpu_custom_call.1
$region0: #{tpu_custom_call.1}
  #allocation0 [shape = 'u32[]', space=smem, size = 0x4, offset = 0x4, fixed_abs, tag = 'smem constant byte address 0x4 - core index']
  #allocation1 [shape = 'u32[144,128]{1,0:T(1,128)}', space=vmem, size = 0x12000, scoped, tag = 'internal scratch']
  #allocation2 [shape = 'f32[1,128]{1,0:T(1,128)}', space=vmem, size = 0x200, scoped, tag = 'scratch operand']
  #allocation3 [shape = 'f32[1,128]{1,0:T(1,128)}', space=vmem, size = 0x200, scoped, tag = 'scratch operand']
  %s0 = inlined_call_operand.hbm [shape: bf16[8,128], index: 0, kind: input, shape index: {}]
  %s1 = inlined_call_operand.hbm [shape: bf16[128,128], index: 1, kind: input, shape index: {}]
  %s2 = inlined_call_operand.vmem [shape: f32[1,128], index: 2, kind: input, shape index: {}]
  %s3 = inlined_call_operand.vmem [shape: f32[1,128], index: 3, kind: input, shape index: {}]
  %s4 = inlined_call_operand.hbm [shape: bf16[128,128], index: 4, kind: input, shape index: {}]
  %s5 = inlined_call_operand.vmem [shape: f32[1,128], index: 5, kind: input, shape index: {}]
  %s6 = inlined_call_operand.hbm [shape: f32[8,128], index: 6, kind: output, shape index: {}]
  %s7 = sld [smem:[#allocation0]]
  $region81: #{tpu_custom_call.1} parent=0
    _
  %s9 = ssub.s32 1, %s7
  %s10 = scalar_select 0, %s9, %s7
  $region1: #{tpu_custom_call.1} parent=0
    #allocation4 [shape = 'u8[2048]{0}', space=vmem, size = 0x800, scoped, tag = 'input window, operand 0, single buffered']
    #allocation5 [shape = 's32[2]{0}', space=sflag, size = 0x8, scoped, tag = 'scoped memory for tpu_custom_call.1']
    #allocation6 [shape = 's32[2]{0}', space=sflag, size = 0x8, scoped, tag = 'scoped memory for tpu_custom_call.1']
    #allocation7 [shape = 'u8[32768]{0}', space=vmem, size = 0x8000, scoped, tag = 'input window, operand 1, single buffered']
    #allocation8 [shape = 's32[1]{0}', space=sflag, size = 0x4, scoped, tag = 'scoped memory for tpu_custom_call.1']
    #allocation9 [shape = 'u8[32768]{0}', space=vmem, size = 0x8000, scoped, tag = 'input window, operand 4, single buffered']
    #allocation10 [shape = 'u8[8192]{0}', space=vmem, size = 0x2000, scoped, tag = 'output window, operand 0']
    %11 = vsyncpa [#allocation5], 0
    %12 = vsyncpa [#allocation8], 0
    %13 = vsyncpa [#allocation6], 0
    %s14 = scalar_lea.sflag [#allocation6], 1
    %15 = vsyncpa %s14, 0
    loop: start=0, step=1, limit=4
    $region2: #{tpu_custom_call.1} parent=1 // loop_pre_header
      _
    $region3: #{tpu_custom_call.1} parent=1 // loop_header
      %s17 = sphi 0, %s21
      %p18 = scmp.ge.s32.totalorder %s17, 4
      %s24 = sphi 0, %s36
      %s25 = sphi 0, %s32
      %s26 = sphi 0, %s24
      %s27 = sphi 0, %s25
      %s28 = sphi 0, %s26
      %s29 = sphi 0, %s27
      %s39 = sphi 0, %s41
      %s42 = sphi 0, %s39
      %s43 = sphi 0, %s42
      %s59 = sphi 0, %s43
      %s63 = sphi 0, %s63
      %s65 = sphi 0, %s63
      %s66 = sphi 0, %s65
      %s80 = sphi 0, %s66
      %s84 = sphi 0, %s84
      %s86 = sphi 0, %s84
      %s87 = sphi 0, %s86
      %s101 = sphi 0, %s87
      %s105 = sphi 0, %s105
      %s107 = sphi 0, %s105
      %s108 = sphi 0, %s107
      %s122 = sphi 0, %s108
      %s126 = sphi 0, %s126
      %s128 = sphi 0, %s126
      %s129 = sphi 0, %s128
      %s143 = sphi 0, %s129
      %s147 = sphi 0, %s147
      %s149 = sphi 0, %s147
      %s150 = sphi 0, %s149
      %s164 = sphi 0, %s150
      %s172 = sphi 0, %s174
      %s175 = sphi 0, %s172
      %s176 = sphi 0, %s175
      %s192 = sphi 0, %s176
    $region4: #{tpu_custom_call.1} parent=1 // loop_header_branch
      %20 = sbr.rel (%p18) target = $region8
    $region5: #{tpu_custom_call.1} parent=1 // loop_body
      %s22 = ssub.s32 %s17, 1
      %s23 = ssub.s32 %s17, 2
      %s30 = sadd.s32 1, %s25
      %p31 = scmp.ge.s32.totalorder %s30, 1
      %s32 = scalar_select %p31, 0, %s30
      %s33 = sadd.s32 1, %s24
      %s34 = scalar_select %p31, %s33, %s24
      %p35 = scmp.ge.s32.totalorder %s34, 2
      %s36 = scalar_select %p35, 0, %s34
      %s37 = ssub.s32 %s25, %s32
      %p38 = scmp.eq.s32.totalorder %s37, 0
      %s40 = sadd.s32 %s39, 1
      %s41 = scalar_select %p38, %s39, %s40
      %p44 = pneg %p38
      %p45 = scmp.eq.s32.totalorder %s17, 1
      %p46 = por %p44, %p45
      %p47 = scmp.ne.s32.totalorder %s39, %s42
      %p48 = scmp.eq.s32.totalorder %s17, 0
      %p49 = por %p47, %p48
      %p50 = scmp.ne.s32.totalorder %s39, %s42
      %p51 = scmp.eq.s32.totalorder %s22, 1
      %p52 = por %p50, %p51
      %p53 = scmp.ne.s32.totalorder %s42, %s43
      %p54 = scmp.eq.s32.totalorder %s22, 0
      %p55 = por %p53, %p54
      %p56 = scmp.ne.s32.totalorder %s42, %s43
      %p57 = scmp.eq.s32.totalorder %s23, 1
      %p58 = por %p56, %p57
      %p60 = scmp.ne.s32.totalorder %s43, %s59
      %p61 = scmp.eq.s32.totalorder %s23, 0
      %p62 = por %p60, %p61
      %s64 = sadd.s32 %s63, 1
      %p67 = scmp.eq.s32.totalorder %s17, 1
      %p68 = scmp.ne.s32.totalorder %s63, %s65
      %p69 = scmp.eq.s32.totalorder %s17, 0
      %p70 = por %p68, %p69
      %p71 = scmp.ne.s32.totalorder %s63, %s65
      %p72 = scmp.eq.s32.totalorder %s22, 1
      %p73 = por %p71, %p72
      %p74 = scmp.ne.s32.totalorder %s65, %s66
      %p75 = scmp.eq.s32.totalorder %s22, 0
      %p76 = por %p74, %p75
      %p77 = scmp.ne.s32.totalorder %s65, %s66
      %p78 = scmp.eq.s32.totalorder %s23, 1
      %p79 = por %p77, %p78
      %p81 = scmp.ne.s32.totalorder %s66, %s80
      %p82 = scmp.eq.s32.totalorder %s23, 0
      %p83 = por %p81, %p82
      %s85 = sadd.s32 %s84, 1
      %p88 = scmp.eq.s32.totalorder %s17, 1
      %p89 = scmp.ne.s32.totalorder %s84, %s86
      %p90 = scmp.eq.s32.totalorder %s17, 0
      %p91 = por %p89, %p90
      %p92 = scmp.ne.s32.totalorder %s84, %s86
      %p93 = scmp.eq.s32.totalorder %s22, 1
      %p94 = por %p92, %p93
      %p95 = scmp.ne.s32.totalorder %s86, %s87
      %p96 = scmp.eq.s32.totalorder %s22, 0
      %p97 = por %p95, %p96
      %p98 = scmp.ne.s32.totalorder %s86, %s87
      %p99 = scmp.eq.s32.totalorder %s23, 1
      %p100 = por %p98, %p99
      %p102 = scmp.ne.s32.totalorder %s87, %s101
      %p103 = scmp.eq.s32.totalorder %s23, 0
      %p104 = por %p102, %p103
      %s106 = sadd.s32 %s105, 1
      %p109 = scmp.eq.s32.totalorder %s17, 1
      %p110 = scmp.ne.s32.totalorder %s105, %s107
      %p111 = scmp.eq.s32.totalorder %s17, 0
      %p112 = por %p110, %p111
      %p113 = scmp.ne.s32.totalorder %s105, %s107
      %p114 = scmp.eq.s32.totalorder %s22, 1
      %p115 = por %p113, %p114
      %p116 = scmp.ne.s32.totalorder %s107, %s108
      %p117 = scmp.eq.s32.totalorder %s22, 0
      %p118 = por %p116, %p117
      %p119 = scmp.ne.s32.totalorder %s107, %s108
      %p120 = scmp.eq.s32.totalorder %s23, 1
      %p121 = por %p119, %p120
      %p123 = scmp.ne.s32.totalorder %s108, %s122
      %p124 = scmp.eq.s32.totalorder %s23, 0
      %p125 = por %p123, %p124
      %s127 = sadd.s32 %s126, 1
      %p130 = scmp.eq.s32.totalorder %s17, 1
      %p131 = scmp.ne.s32.totalorder %s126, %s128
      %p132 = scmp.eq.s32.totalorder %s17, 0
      %p133 = por %p131, %p132
      %p134 = scmp.ne.s32.totalorder %s126, %s128
      %p135 = scmp.eq.s32.totalorder %s22, 1
      %p136 = por %p134, %p135
      %p137 = scmp.ne.s32.totalorder %s128, %s129
      %p138 = scmp.eq.s32.totalorder %s22, 0
      %p139 = por %p137, %p138
      %p140 = scmp.ne.s32.totalorder %s128, %s129
      %p141 = scmp.eq.s32.totalorder %s23, 1
      %p142 = por %p140, %p141
      %p144 = scmp.ne.s32.totalorder %s129, %s143
      %p145 = scmp.eq.s32.totalorder %s23, 0
      %p146 = por %p144, %p145
      %s148 = sadd.s32 %s147, 1
      %p151 = scmp.eq.s32.totalorder %s17, 1
      %p152 = scmp.ne.s32.totalorder %s147, %s149
      %p153 = scmp.eq.s32.totalorder %s17, 0
      %p154 = por %p152, %p153
      %p155 = scmp.ne.s32.totalorder %s147, %s149
      %p156 = scmp.eq.s32.totalorder %s22, 1
      %p157 = por %p155, %p156
      %p158 = scmp.ne.s32.totalorder %s149, %s150
      %p159 = scmp.eq.s32.totalorder %s22, 0
      %p160 = por %p158, %p159
      %p161 = scmp.ne.s32.totalorder %s149, %s150
      %p162 = scmp.eq.s32.totalorder %s23, 1
      %p163 = por %p161, %p162
      %p165 = scmp.ne.s32.totalorder %s150, %s164
      %p166 = scmp.eq.s32.totalorder %s23, 0
      %p167 = por %p165, %p166
      %s168 = smul.u32 %s25, %s24
      %s169 = smul.u32 %s32, %s36
      %s170 = ssub.s32 %s168, %s169
      %p171 = scmp.eq.s32.totalorder %s170, 0
      %s173 = sadd.s32 %s172, 1
      %s174 = scalar_select %p171, %s172, %s173
      %p177 = pneg %p171
      %p178 = scmp.eq.s32.totalorder %s17, 1
      %p179 = por %p177, %p178
      %p180 = scmp.ne.s32.totalorder %s172, %s175
      %p181 = scmp.eq.s32.totalorder %s17, 0
      %p182 = por %p180, %p181
      %p183 = scmp.ne.s32.totalorder %s172, %s175
      %p184 = scmp.eq.s32.totalorder %s22, 1
      %p185 = por %p183, %p184
      %p186 = scmp.ne.s32.totalorder %s175, %s176
      %p187 = scmp.eq.s32.totalorder %s22, 0
      %p188 = por %p186, %p187
      %p189 = scmp.ne.s32.totalorder %s175, %s176
      %p190 = scmp.eq.s32.totalorder %s23, 1
      %p191 = por %p189, %p190
      %p193 = scmp.ne.s32.totalorder %s176, %s192
      %p194 = scmp.eq.s32.totalorder %s23, 0
      %p195 = por %p193, %p194
      %p196 = scmp.le.s32.totalorder 1, %s17
      %p197 = scmp.lt.s32.totalorder %s17, 3
      %p198 = pnand %p196, %p197
      %p199 = pneg %p198
      // Predicated region
      $region9: #{tpu_custom_call.1} parent=5 // pred_check
        _
      $region10: #{tpu_custom_call.1} parent=5 // pred_check_branch
        %201 = sbr.rel (%p198) target = $region12
      $region11: #{tpu_custom_call.1} parent=5 // pred_region
        %s202 = ssub.s32 %s17, 1
        // Predicated region
        $region13: #{tpu_custom_call.1} parent=11 // pred_check
          %p203 = pneg %p55
        $region14: #{tpu_custom_call.1} parent=11 // pred_check_branch
          %205 = sbr.rel (%p203) target = $region16
        $region15: #{tpu_custom_call.1} parent=11 // pred_region
          %s207 = ssub.s32 64, 64
          %208 = vsyncadd [#allocation5], %s207
          %s209 = smul.addr %s27, 64
          %s210 = scalar_lea.hbm %s0, %s209
          %s212 = sshll.u32 [#allocation4], 4
          %s213 = int_to_ptr.vmem [resolvable:$true] %s212
          %215 = dma.hbm_to_vmem [thread:$0]  %s210, 64, %s213, [#allocation5]
        $region16: #{tpu_custom_call.1} parent=11 // pred_fallthru
          _
        // Predicated region
        $region17: #{tpu_custom_call.1} parent=11 // pred_check
          %p216 = pneg %p76
        $region18: #{tpu_custom_call.1} parent=11 // pred_check_branch
          %218 = sbr.rel (%p216) target = $region20
        $region19: #{tpu_custom_call.1} parent=11 // pred_region
          %s220 = ssub.s32 1024, 1024
          %221 = vsyncadd [#allocation8], %s220
          %s222 = sshll.u32 [#allocation7], 4
          %s223 = int_to_ptr.vmem [resolvable:$true] %s222
          %228 = dma.hbm_to_vmem [thread:$0]  %s1, 1024, %s223, [#allocation8], 64, 64, 4
        $region20: #{tpu_custom_call.1} parent=11 // pred_fallthru
          _
        // Predicated region
        $region21: #{tpu_custom_call.1} parent=11 // pred_check
          %p229 = pneg %p97
        $region22: #{tpu_custom_call.1} parent=11 // pred_check_branch
          %231 = sbr.rel (%p229) target = $region24
        $region23: #{tpu_custom_call.1} parent=11 // pred_region
          _
        $region24: #{tpu_custom_call.1} parent=11 // pred_fallthru
          _
        // Predicated region
        $region25: #{tpu_custom_call.1} parent=11 // pred_check
          %p232 = pneg %p118
        $region26: #{tpu_custom_call.1} parent=11 // pred_check_branch
          %234 = sbr.rel (%p232) target = $region28
        $region27: #{tpu_custom_call.1} parent=11 // pred_region
          _
        $region28: #{tpu_custom_call.1} parent=11 // pred_fallthru
          _
        // Predicated region
        $region29: #{tpu_custom_call.1} parent=11 // pred_check
          %p235 = pneg %p139
        $region30: #{tpu_custom_call.1} parent=11 // pred_check_branch
          %237 = sbr.rel (%p235) target = $region32
        $region31: #{tpu_custom_call.1} parent=11 // pred_region
          %s239 = ssub.s32 1024, 1024
          %240 = vsyncadd [#allocation8], %s239
          %s241 = sshll.u32 [#allocation9], 4
          %s242 = int_to_ptr.vmem [resolvable:$true] %s241
          %247 = dma.hbm_to_vmem [thread:$0]  %s4, 1024, %s242, [#allocation8], 64, 64, 4
        $region32: #{tpu_custom_call.1} parent=11 // pred_fallthru
          _
        // Predicated region
        $region33: #{tpu_custom_call.1} parent=11 // pred_check
          %p248 = pneg %p160
        $region34: #{tpu_custom_call.1} parent=11 // pred_check_branch
          %250 = sbr.rel (%p248) target = $region36
        $region35: #{tpu_custom_call.1} parent=11 // pred_region
          _
        $region36: #{tpu_custom_call.1} parent=11 // pred_fallthru
          _
      $region12: #{tpu_custom_call.1} parent=5 // pred_fallthru
        _
      %p251 = scmp.lt.s32.totalorder %s17, 2
      // Predicated region
      $region37: #{tpu_custom_call.1} parent=5 // pred_check
        %p252 = pneg %p251
      $region38: #{tpu_custom_call.1} parent=5 // pred_check_branch
        %254 = sbr.rel (%p252) target = $region40
      $region39: #{tpu_custom_call.1} parent=5 // pred_region
        _
      $region40: #{tpu_custom_call.1} parent=5 // pred_fallthru
        _
      %p255 = scmp.le.s32.totalorder 1, %s17
      %p256 = scmp.lt.s32.totalorder %s17, 3
      %p257 = pnand %p255, %p256
      %p258 = pneg %p257
      // Predicated region
      $region41: #{tpu_custom_call.1} parent=5 // pred_check
        _
      $region42: #{tpu_custom_call.1} parent=5 // pred_check_branch
        %260 = sbr.rel (%p257) target = $region44
      $region43: #{tpu_custom_call.1} parent=5 // pred_region
        %s261 = ssub.s32 %s17, 1
        // Predicated region
        $region45: #{tpu_custom_call.1} parent=43 // pred_check
          %p262 = pneg %p55
        $region46: #{tpu_custom_call.1} parent=43 // pred_check_branch
          %264 = sbr.rel (%p262) target = $region48
        $region47: #{tpu_custom_call.1} parent=43 // pred_region
          %265 = dma.done [#allocation5], 64
        $region48: #{tpu_custom_call.1} parent=43 // pred_fallthru
          _
        // Predicated region
        $region49: #{tpu_custom_call.1} parent=43 // pred_check
          %p266 = pneg %p76
        $region50: #{tpu_custom_call.1} parent=43 // pred_check_branch
          %268 = sbr.rel (%p266) target = $region52
        $region51: #{tpu_custom_call.1} parent=43 // pred_region
          %269 = dma.done [#allocation8], 1024
        $region52: #{tpu_custom_call.1} parent=43 // pred_fallthru
          _
        // Predicated region
        $region53: #{tpu_custom_call.1} parent=43 // pred_check
          %p270 = pneg %p139
        $region54: #{tpu_custom_call.1} parent=43 // pred_check_branch
          %272 = sbr.rel (%p270) target = $region56
        $region55: #{tpu_custom_call.1} parent=43 // pred_region
          %273 = dma.done [#allocation8], 1024
        $region56: #{tpu_custom_call.1} parent=43 // pred_fallthru
          _
        %p274 = pneg %p55
        %p275 = pneg %p52
        %p276 = pneg %p76
        %p277 = pneg %p73
        %p278 = pneg %p97
        %p279 = pneg %p94
        %p280 = pneg %p118
        %p281 = pneg %p115
        %p282 = pneg %p139
        %p283 = pneg %p136
        %p284 = pneg %p160
        %p285 = pneg %p157
        %p286 = pneg %p188
        %p287 = pneg %p185
        %s288 = sand.u32 %s175, 1
        %s289 = scalar_lea.sflag [#allocation6], %s288
        %s290 = sand.u32 %s175, 1
        %s291 = smul.addr %s290, 8
        %s292 = scalar_lea.vmem [#allocation10], %s291
        %s293 = smul.u32 %s27, %s26
        %p295 = scmp.eq.s32.totalorder %s26, 0
        %p296 = scmp.eq.s32.totalorder %s27, 0
        %p297 = pnand %p295, %p296
        %p298 = pneg %p297
        // Predicated region
        $region57: #{tpu_custom_call.1} parent=43 // pred_check
          _
        $region58: #{tpu_custom_call.1} parent=43 // pred_check_branch
          %300 = sbr.rel (%p297) target = $region60
        $region59: #{tpu_custom_call.1} parent=43 // pred_region
          %301 = vst [vmem:[#allocation2] sm:$0x1] 0.0
          %302 = vst [vmem:[#allocation3] sm:$0x1] 0.0
        $region60: #{tpu_custom_call.1} parent=43 // pred_fallthru
          _
        // Predicated region
        $region61: #{tpu_custom_call.1} parent=43 // pred_check
          %p303 = pneg %p295
        $region62: #{tpu_custom_call.1} parent=43 // pred_check_branch
          %305 = sbr.rel (%p303) target = $region64
        $region63: #{tpu_custom_call.1} parent=43 // pred_region
          %v306 = vld [vmem:[#allocation4] sm:$0xf]
          %v307 = vld [vmem:[#allocation7] sm:$0xf]
          %v308 = vld [vmem:[#allocation7 + $0x4] sm:$0xf]
          %v309 = vld [vmem:[#allocation7 + $0x8] sm:$0xf]
          %v310 = vld [vmem:[#allocation7 + $0xc] sm:$0xf]
          %v311 = vld [vmem:[#allocation7 + $0x10] sm:$0xf]
          %v312 = vld [vmem:[#allocation7 + $0x14] sm:$0xf]
          %v313 = vld [vmem:[#allocation7 + $0x18] sm:$0xf]
          %v314 = vld [vmem:[#allocation7 + $0x1c] sm:$0xf]
          %v315 = vld [vmem:[#allocation7 + $0x20] sm:$0xf]
          %v316 = vld [vmem:[#allocation7 + $0x24] sm:$0xf]
          %v317 = vld [vmem:[#allocation7 + $0x28] sm:$0xf]
          %v318 = vld [vmem:[#allocation7 + $0x2c] sm:$0xf]
          %v319 = vld [vmem:[#allocation7 + $0x30] sm:$0xf]
          %v320 = vld [vmem:[#allocation7 + $0x34] sm:$0xf]
          %v321 = vld [vmem:[#allocation7 + $0x38] sm:$0xf]
          %v322 = vld [vmem:[#allocation7 + $0x3c] sm:$0xf]
          %v339 = vunpack.c.l.b16 %v307
          %v340 = vunpack.c.l.b16 %v308
          %v341 = vunpack.c.l.b16 %v309
          %v342 = vunpack.c.l.b16 %v310
          %v343 = vunpack.c.l.b16 %v311
          %v344 = vunpack.c.l.b16 %v312
          %v345 = vunpack.c.l.b16 %v313
          %v346 = vunpack.c.l.b16 %v314
          %v347 = vunpack.c.l.b16 %v315
          %v348 = vunpack.c.l.b16 %v316
          %v349 = vunpack.c.l.b16 %v317
          %v350 = vunpack.c.l.b16 %v318
          %v351 = vunpack.c.l.b16 %v319
          %v352 = vunpack.c.l.b16 %v320
          %v353 = vunpack.c.l.b16 %v321
          %v354 = vunpack.c.l.b16 %v322
          %v355 = vpack.c.b16 %v340, %v339
          %v356 = vpack.c.b16 %v342, %v341
          %v357 = vpack.c.b16 %v344, %v343
          %v358 = vpack.c.b16 %v346, %v345
          %v359 = vpack.c.b16 %v348, %v347
          %v360 = vpack.c.b16 %v350, %v349
          %v361 = vpack.c.b16 %v352, %v351
          %v362 = vpack.c.b16 %v354, %v353
          %371 = vmatprep.subr.bf16.mxu0 0
          %372 = vmatpush1.bf16.msra.mxu0 %v355
          %373 = vmatprep.subr.bf16.mxu0 0
          %374 = vmatpush1.bf16.msra.mxu0 %v356
          %375 = vmatprep.subr.bf16.mxu0 0
          %376 = vmatpush1.bf16.msra.mxu0 %v357
          %377 = vmatprep.subr.bf16.mxu0 0
          %378 = vmatpush1.bf16.msra.mxu0 %v358
          %379 = vmatprep.subr.bf16.mxu0 0
          %380 = vmatpush1.bf16.msra.mxu0 %v359
          %381 = vmatprep.subr.bf16.mxu0 0
          %382 = vmatpush1.bf16.msra.mxu0 %v360
          %383 = vmatprep.subr.bf16.mxu0 0
          %384 = vmatpush1.bf16.msra.mxu0 %v361
          %385 = vmatprep.subr.bf16.mxu0 0
          %386 = vmatpush1.bf16.msra.mxu0 %v362
          %387 = vmatprep.subr.bf16.mxu0 0
          %388 = vmatpush1.bf16.msra.mxu0 0
          %389 = vmatprep.subr.bf16.mxu0 0
          %390 = vmatpush1.bf16.msra.mxu0 0
          %391 = vmatprep.subr.bf16.mxu0 0
          %392 = vmatpush1.bf16.msra.mxu0 0
          %393 = vmatprep.subr.bf16.mxu0 0
          %394 = vmatpush1.bf16.msra.mxu0 0
          %395 = vmatprep.subr.bf16.mxu0 0
          %396 = vmatpush1.bf16.msra.mxu0 0
          %397 = vmatprep.subr.bf16.mxu0 0
          %398 = vmatpush1.bf16.msra.mxu0 0
          %399 = vmatprep.subr.bf16.mxu0 0
          %400 = vmatpush1.bf16.msra.mxu0 0
          %401 = vmatprep.subr.bf16.mxu0 0
          %402 = vmatpush1.bf16.msra.mxu0 0
          %403 = vmatprep.mubr.bf16.mxu0 0
          %404 = vmatmul.mubr.bf16.gmra.mrb[0].mxu0 %v306
          %v405 = vpop.f32.mrb[0].mxu0
          %v406 = vadd.f32 0.0, %v405
          %v407 = vpop.f32.mrb[0].mxu0
          %v408 = vpop.f32.mrb[0].mxu0
          %v409 = vpop.f32.mrb[0].mxu0
          %410 = vdwg.mxu0
          %v411 = vld [vmem:[#allocation2] sm:$0x1]
          %v412 = vrot.slane %v406, 4
          %v413 = vadd.f32 %v406, %v412
          %v414 = vrot.slane %v413, 2
          %v415 = vadd.f32 %v413, %v414
          %v416 = vrot.slane %v415, 1
          %v417 = vadd.f32 %v415, %v416
          %v418 = vadd.f32 %v411, %v417
          %419 = vst [vmem:[#allocation2] sm:$0x1] %v418
          %v420 = vld [vmem:[#allocation3] sm:$0x1]
          %v421 = vmul.f32 %v406, %v406
          %v422 = vrot.slane %v421, 4
          %v423 = vadd.f32 %v421, %v422
          %v424 = vrot.slane %v423, 2
          %v425 = vadd.f32 %v423, %v424
          %v426 = vrot.slane %v425, 1
          %v427 = vadd.f32 %v425, %v426
          %v428 = vadd.f32 %v420, %v427
          %429 = vst [vmem:[#allocation3] sm:$0x1] %v428
        $region64: #{tpu_custom_call.1} parent=43 // pred_fallthru
          _
        %p430 = scmp.eq.s32.totalorder %s26, 1
        // Predicated region
        $region65: #{tpu_custom_call.1} parent=43 // pred_check
          %p431 = pneg %p430
        $region66: #{tpu_custom_call.1} parent=43 // pred_check_branch
          %433 = sbr.rel (%p431) target = $region68
        $region67: #{tpu_custom_call.1} parent=43 // pred_region
          %v434 = vld [vmem:[#allocation2] sm:$0x1]
          %v435 = vmul.f32 %v434, 0.125
          %v436 = vld [vmem:[#allocation3] sm:$0x1]
          %v437 = vmul.f32 %v436, 0.125
          %v438 = vmul.f32 %v435, %v435
          %v439 = vsub.f32 %v437, %v438
          %v440 = vmax.f32 %v439, 0.0
          %v441 = vadd.f32 %v440, 1e-05
          %v442 = vrsqrt.pop %v441
          %v443 = vld [vmem:[%s2] sm:$0x1]
          %v444 = vmul.f32 %v442, %v443
          %v445 = vld [vmem:[#allocation4] sm:$0xf]
          %v446 = vld [vmem:[#allocation7] sm:$0xf]
          %v447 = vld [vmem:[#allocation7 + $0x4] sm:$0xf]
          %v448 = vld [vmem:[#allocation7 + $0x8] sm:$0xf]
          %v449 = vld [vmem:[#allocation7 + $0xc] sm:$0xf]
          %v450 = vld [vmem:[#allocation7 + $0x10] sm:$0xf]
          %v451 = vld [vmem:[#allocation7 + $0x14] sm:$0xf]
          %v452 = vld [vmem:[#allocation7 + $0x18] sm:$0xf]
          %v453 = vld [vmem:[#allocation7 + $0x1c] sm:$0xf]
          %v454 = vld [vmem:[#allocation7 + $0x20] sm:$0xf]
          %v455 = vld [vmem:[#allocation7 + $0x24] sm:$0xf]
          %v456 = vld [vmem:[#allocation7 + $0x28] sm:$0xf]
          %v457 = vld [vmem:[#allocation7 + $0x2c] sm:$0xf]
          %v458 = vld [vmem:[#allocation7 + $0x30] sm:$0xf]
          %v459 = vld [vmem:[#allocation7 + $0x34] sm:$0xf]
          %v460 = vld [vmem:[#allocation7 + $0x38] sm:$0xf]
          %v461 = vld [vmem:[#allocation7 + $0x3c] sm:$0xf]
          %v478 = vunpack.c.l.b16 %v446
          %v479 = vunpack.c.l.b16 %v447
          %v480 = vunpack.c.l.b16 %v448
          %v481 = vunpack.c.l.b16 %v449
          %v482 = vunpack.c.l.b16 %v450
          %v483 = vunpack.c.l.b16 %v451
          %v484 = vunpack.c.l.b16 %v452
          %v485 = vunpack.c.l.b16 %v453
          %v486 = vunpack.c.l.b16 %v454
          %v487 = vunpack.c.l.b16 %v455
          %v488 = vunpack.c.l.b16 %v456
          %v489 = vunpack.c.l.b16 %v457
          %v490 = vunpack.c.l.b16 %v458
          %v491 = vunpack.c.l.b16 %v459
          %v492 = vunpack.c.l.b16 %v460
          %v493 = vunpack.c.l.b16 %v461
          %v494 = vpack.c.b16 %v479, %v478
          %v495 = vpack.c.b16 %v481, %v480
          %v496 = vpack.c.b16 %v483, %v482
          %v497 = vpack.c.b16 %v485, %v484
          %v498 = vpack.c.b16 %v487, %v486
          %v499 = vpack.c.b16 %v489, %v488
          %v500 = vpack.c.b16 %v491, %v490
          %v501 = vpack.c.b16 %v493, %v492
          %510 = vmatprep.subr.bf16.mxu0 0
          %511 = vmatpush1.bf16.msra.mxu0 %v494
          %512 = vmatprep.subr.bf16.mxu0 0
          %513 = vmatpush1.bf16.msra.mxu0 %v495
          %514 = vmatprep.subr.bf16.mxu0 0
          %515 = vmatpush1.bf16.msra.mxu0 %v496
          %516 = vmatprep.subr.bf16.mxu0 0
          %517 = vmatpush1.bf16.msra.mxu0 %v497
          %518 = vmatprep.subr.bf16.mxu0 0
          %519 = vmatpush1.bf16.msra.mxu0 %v498
          %520 = vmatprep.subr.bf16.mxu0 0
          %521 = vmatpush1.bf16.msra.mxu0 %v499
          %522 = vmatprep.subr.bf16.mxu0 0
          %523 = vmatpush1.bf16.msra.mxu0 %v500
          %524 = vmatprep.subr.bf16.mxu0 0
          %525 = vmatpush1.bf16.msra.mxu0 %v501
          %526 = vmatprep.subr.bf16.mxu0 0
          %527 = vmatpush1.bf16.msra.mxu0 0
          %528 = vmatprep.subr.bf16.mxu0 0
          %529 = vmatpush1.bf16.msra.mxu0 0
          %530 = vmatprep.subr.bf16.mxu0 0
          %531 = vmatpush1.bf16.msra.mxu0 0
          %532 = vmatprep.subr.bf16.mxu0 0
          %533 = vmatpush1.bf16.msra.mxu0 0
          %534 = vmatprep.subr.bf16.mxu0 0
          %535 = vmatpush1.bf16.msra.mxu0 0
          %536 = vmatprep.subr.bf16.mxu0 0
          %537 = vmatpush1.bf16.msra.mxu0 0
          %538 = vmatprep.subr.bf16.mxu0 0
          %539 = vmatpush1.bf16.msra.mxu0 0
          %540 = vmatprep.subr.bf16.mxu0 0
          %541 = vmatpush1.bf16.msra.mxu0 0
          %542 = vmatprep.mubr.bf16.mxu0 0
          %543 = vmatmul.mubr.bf16.gmra.mrb[0].mxu0 %v445
          %v544 = vpop.f32.mrb[0].mxu0
          %v545 = vadd.f32 0.0, %v544
          %v546 = vpop.f32.mrb[0].mxu0
          %v547 = vpop.f32.mrb[0].mxu0
          %v548 = vpop.f32.mrb[0].mxu0
          %549 = vdwg.mxu0
          %v551 = vlaneseq
          %v552 = vshrl.u32 %v551, 7
          %v553 = vsub.s32 0, %v552
          %v554 = vrot.slane %v435, %v553
          %v556 = vsub.f32 %v545, %v554
          %v558 = vlaneseq
          %v559 = vshrl.u32 %v558, 7
          %v560 = vsub.s32 0, %v559
          %v561 = vrot.slane %v444, %v560
          %v563 = vmul.f32 %v556, %v561
          %v564 = vld [vmem:[%s3] sm:$0x1]
          %v566 = vlaneseq
          %v567 = vshrl.u32 %v566, 7
          %v568 = vsub.s32 0, %v567
          %v569 = vrot.slane %v564, %v568
          %v571 = vadd.f32 %v563, %v569
          %v572 = vmax.f32 %v571, 0.0
          %v573 = vpack.c.bf16 %v572, %v572
          %v574 = vld [vmem:[#allocation9] sm:$0xf]
          %v575 = vld [vmem:[#allocation9 + $0x4] sm:$0xf]
          %v576 = vld [vmem:[#allocation9 + $0x8] sm:$0xf]
          %v577 = vld [vmem:[#allocation9 + $0xc] sm:$0xf]
          %v578 = vld [vmem:[#allocation9 + $0x10] sm:$0xf]
          %v579 = vld [vmem:[#allocation9 + $0x14] sm:$0xf]
          %v580 = vld [vmem:[#allocation9 + $0x18] sm:$0xf]
          %v581 = vld [vmem:[#allocation9 + $0x1c] sm:$0xf]
          %v582 = vld [vmem:[#allocation9 + $0x20] sm:$0xf]
          %v583 = vld [vmem:[#allocation9 + $0x24] sm:$0xf]
          %v584 = vld [vmem:[#allocation9 + $0x28] sm:$0xf]
          %v585 = vld [vmem:[#allocation9 + $0x2c] sm:$0xf]
          %v586 = vld [vmem:[#allocation9 + $0x30] sm:$0xf]
          %v587 = vld [vmem:[#allocation9 + $0x34] sm:$0xf]
          %v588 = vld [vmem:[#allocation9 + $0x38] sm:$0xf]
          %v589 = vld [vmem:[#allocation9 + $0x3c] sm:$0xf]
          %v590 = vld [vmem:[%s5] sm:$0x1]
          %v592 = vlaneseq
          %v593 = vshrl.u32 %v592, 7
          %v594 = vsub.s32 0, %v593
          %v595 = vrot.slane %v590, %v594
          %v613 = vunpack.c.l.b16 %v574
          %v614 = vunpack.c.l.b16 %v575
          %v615 = vunpack.c.l.b16 %v576
          %v616 = vunpack.c.l.b16 %v577
          %v617 = vunpack.c.l.b16 %v578
          %v618 = vunpack.c.l.b16 %v579
          %v619 = vunpack.c.l.b16 %v580
          %v620 = vunpack.c.l.b16 %v581
          %v621 = vunpack.c.l.b16 %v582
          %v622 = vunpack.c.l.b16 %v583
          %v623 = vunpack.c.l.b16 %v584
          %v624 = vunpack.c.l.b16 %v585
          %v625 = vunpack.c.l.b16 %v586
          %v626 = vunpack.c.l.b16 %v587
          %v627 = vunpack.c.l.b16 %v588
          %v628 = vunpack.c.l.b16 %v589
          %v629 = vpack.c.b16 %v614, %v613
          %v630 = vpack.c.b16 %v616, %v615
          %v631 = vpack.c.b16 %v618, %v617
          %v632 = vpack.c.b16 %v620, %v619
          %v633 = vpack.c.b16 %v622, %v621
          %v634 = vpack.c.b16 %v624, %v623
          %v635 = vpack.c.b16 %v626, %v625
          %v636 = vpack.c.b16 %v628, %v627
          %645 = vmatprep.subr.bf16.mxu0 0
          %646 = vmatpush1.bf16.msra.mxu0 %v629
          %647 = vmatprep.subr.bf16.mxu0 0
          %648 = vmatpush1.bf16.msra.mxu0 %v630
          %649 = vmatprep.subr.bf16.mxu0 0
          %650 = vmatpush1.bf16.msra.mxu0 %v631
          %651 = vmatprep.subr.bf16.mxu0 0
          %652 = vmatpush1.bf16.msra.mxu0 %v632
          %653 = vmatprep.subr.bf16.mxu0 0
          %654 = vmatpush1.bf16.msra.mxu0 %v633
          %655 = vmatprep.subr.bf16.mxu0 0
          %656 = vmatpush1.bf16.msra.mxu0 %v634
          %657 = vmatprep.subr.bf16.mxu0 0
          %658 = vmatpush1.bf16.msra.mxu0 %v635
          %659 = vmatprep.subr.bf16.mxu0 0
          %660 = vmatpush1.bf16.msra.mxu0 %v636
          %661 = vmatprep.subr.bf16.mxu0 0
          %662 = vmatpush1.bf16.msra.mxu0 0
          %663 = vmatprep.subr.bf16.mxu0 0
          %664 = vmatpush1.bf16.msra.mxu0 0
          %665 = vmatprep.subr.bf16.mxu0 0
          %666 = vmatpush1.bf16.msra.mxu0 0
          %667 = vmatprep.subr.bf16.mxu0 0
          %668 = vmatpush1.bf16.msra.mxu0 0
          %669 = vmatprep.subr.bf16.mxu0 0
          %670 = vmatpush1.bf16.msra.mxu0 0
          %671 = vmatprep.subr.bf16.mxu0 0
          %672 = vmatpush1.bf16.msra.mxu0 0
          %673 = vmatprep.subr.bf16.mxu0 0
          %674 = vmatpush1.bf16.msra.mxu0 0
          %675 = vmatprep.subr.bf16.mxu0 0
          %676 = vmatpush1.bf16.msra.mxu0 0
          %677 = vmatprep.mubr.bf16.mxu0 0
          %678 = vmatmul.mubr.bf16.gmra.mrb[0].mxu0 %v573
          %v679 = vpop.f32.mrb[0].mxu0
          %v680 = vadd.f32 %v595, %v679
          %v681 = vpop.f32.mrb[0].mxu0
          %v682 = vpop.f32.mrb[0].mxu0
          %v683 = vpop.f32.mrb[0].mxu0
          %684 = vdwg.mxu0
          %685 = vst [vmem:[%s292] sm:$0xff] %v680
        $region68: #{tpu_custom_call.1} parent=43 // pred_fallthru
          _
        %s686 = sand.u32 %s175, 1
        %s687 = scalar_lea.sflag [#allocation6], %s686
        %s688 = sand.u32 %s175, 1
        %s689 = smul.addr %s688, 8
        %s690 = scalar_lea.vmem [#allocation10], %s689
        // Predicated region
        $region69: #{tpu_custom_call.1} parent=43 // pred_check
          %p691 = pneg %p185
        $region70: #{tpu_custom_call.1} parent=43 // pred_check_branch
          %693 = sbr.rel (%p691) target = $region72
        $region71: #{tpu_custom_call.1} parent=43 // pred_region
          %s694 = smul.u32 %s27, %s26
          %s696 = ssub.s32 128, 128
          %697 = vsyncadd %s687, %s696
          %s698 = smul.addr %s694, 128
          %s699 = scalar_lea.hbm %s6, %s698
          %s701 = sshll.u32 %s690, 4
          %s702 = int_to_ptr.vmem [resolvable:$true] %s701
          %704 = dma.vmem_to_hbm [thread:$0]  %s702, 128, %s699, %s687
        $region72: #{tpu_custom_call.1} parent=43 // pred_fallthru
          _
      $region44: #{tpu_custom_call.1} parent=5 // pred_fallthru
        _
      %p705 = scmp.le.s32.totalorder 2, %s17
      // Predicated region
      $region73: #{tpu_custom_call.1} parent=5 // pred_check
        %p706 = pneg %p705
      $region74: #{tpu_custom_call.1} parent=5 // pred_check_branch
        %708 = sbr.rel (%p706) target = $region76
      $region75: #{tpu_custom_call.1} parent=5 // pred_region
        %s709 = ssub.s32 %s17, 2
        // Predicated region
        $region77: #{tpu_custom_call.1} parent=75 // pred_check
          %p710 = pneg %p191
        $region78: #{tpu_custom_call.1} parent=75 // pred_check_branch
          %712 = sbr.rel (%p710) target = $region80
        $region79: #{tpu_custom_call.1} parent=75 // pred_region
          %s713 = sand.u32 %s176, 1
          %s714 = scalar_lea.sflag [#allocation6], %s713
          %s715 = sand.u32 %s176, 1
          %s716 = smul.addr %s715, 8
          %s717 = scalar_lea.vmem [#allocation10], %s716
          %718 = dma.done %s714, 128
        $region80: #{tpu_custom_call.1} parent=75 // pred_fallthru
          _
      $region76: #{tpu_custom_call.1} parent=5 // pred_fallthru
        _
    $region6: #{tpu_custom_call.1} parent=1 // loop_footer
      %s21 = sadd.s32 1, %s17
    $region7: #{tpu_custom_call.1} parent=1 // loop_footer_branch
      %16 = sbr.rel target = $region3
    $region8: #{tpu_custom_call.1} parent=1 // loop_exit
      _
    %719 = vsyncpa [#allocation5], 1
    %s720 = scalar_lea.sflag [#allocation5], 1
    %721 = vsyncpa %s720, 1
    %722 = vsyncpa [#allocation8], 1
    %723 = vsyncpa [#allocation6], 1
    %s724 = scalar_lea.sflag [#allocation6], 1
    %725 = vsyncpa %s724, 1

</llo_original>
